<compile_context>
chip_gen: v7x
topology: tpu7x:2x2x1
jax: 0.10.0
libtpu: 0.0.40
codegen_flags: <defaults>
</compile_context>

<pallas_src>
import jax
import jax.numpy as jnp
from jax.experimental import pallas as pl
from jax.experimental.pallas import tpu as pltpu

_LANES = 128


def _add_kernel(a_ref, b_ref, o_ref):
    # Single whole-tile VPU add; all operands resident in VMEM.
    o_ref[...] = a_ref[...] + b_ref[...]


def pallas_add(a: jax.Array, b: jax.Array) -> jax.Array:
    assert a.shape == b.shape and a.dtype == b.dtype
    orig_shape = a.shape

    total = 1
    for d in orig_shape:
        total *= d

    # Lane-dense work shape when possible (contiguous reshape -> free bitcast).
    if total % _LANES == 0:
        work_shape = (total // _LANES, _LANES)
    else:
        work_shape = orig_shape  # natural-shape fallback (block == full dims)

    a2 = a.reshape(work_shape)
    b2 = b.reshape(work_shape)

    out = pl.pallas_call(
        _add_kernel,
        out_shape=jax.ShapeDtypeStruct(work_shape, a.dtype),
        in_specs=[
            pl.BlockSpec(memory_space=pltpu.MemorySpace.VMEM),
            pl.BlockSpec(memory_space=pltpu.MemorySpace.VMEM),
        ],
        out_specs=pl.BlockSpec(memory_space=pltpu.MemorySpace.VMEM),
    )(a2, b2)

    return out.reshape(orig_shape)


if __name__ == "__main__":
    key = jax.random.PRNGKey(0)
    k1, k2 = jax.random.split(key)
    # Shapes implied by the module's forward: [1, 384, 7, 7] (already small).
    x698 = jax.random.normal(k1, (1, 384, 7, 7), dtype=jnp.float32)
    x683 = jax.random.normal(k2, (1, 384, 7, 7), dtype=jnp.float32)

    out = pallas_add(x698, x683)
    jax.block_until_ready(out)

    # Correctness check against plain JAX reference.
    ref = x698 + x683
    assert out.shape == ref.shape
    assert jnp.allclose(out, ref, atol=1e-6), "mismatch vs reference"

    print("KERNEL_OK")
</pallas_src>

<mosaic_0001>
module attributes {stable_mosaic.version = 11 : i64} {
  func.func @_add_kernel(%arg0: memref<147x128xf32, #tpu.memory_space<vmem>>, %arg1: memref<147x128xf32, #tpu.memory_space<vmem>>, %arg2: memref<147x128xf32, #tpu.memory_space<vmem>>) attributes {dimension_semantics = [], scalar_prefetch = 0 : i64, scratch_operands = 0 : i64, tpu.core_type = #tpu.core_type<tc>} {
    %c0 = arith.constant 0 : index
    %c0_0 = arith.constant 0 : index
    %0 = vector.load %arg0[%c0, %c0_0] : memref<147x128xf32, #tpu.memory_space<vmem>>, vector<147x128xf32>
    %c0_1 = arith.constant 0 : index
    %c0_2 = arith.constant 0 : index
    %1 = vector.load %arg1[%c0_1, %c0_2] : memref<147x128xf32, #tpu.memory_space<vmem>>, vector<147x128xf32>
    %2 = arith.addf %0, %1 : vector<147x128xf32>
    %c0_3 = arith.constant 0 : index
    %c0_4 = arith.constant 0 : index
    %3 = vector.load %arg2[%c0_3, %c0_4] : memref<147x128xf32, #tpu.memory_space<vmem>>, vector<147x128xf32>
    tpu.vector_store %arg2[%c0_3, %c0_4], %2 {strides = array<i32>} : memref<147x128xf32, #tpu.memory_space<vmem>>, vector<147x128xf32>,
    return
  }
}

</mosaic_0001>

<llo_original>
// kernel: tpu_custom_call.1
$region0: #{tpu_custom_call.1}
  #allocation0 [shape = 'u32[]', space=smem, size = 0x4, offset = 0x4, fixed_abs, tag = 'smem constant byte address 0x4 - core index']
  #allocation1 [shape = 'u32[144,128]{1,0:T(1,128)}', space=vmem, size = 0x12000, scoped, tag = 'internal scratch']
  %s0 = inlined_call_operand.hbm [shape: f32[147,128], index: 0, kind: input, shape index: {}]
  %s1 = inlined_call_operand.hbm [shape: f32[147,128], index: 1, kind: input, shape index: {}]
  %s2 = inlined_call_operand.hbm [shape: f32[147,128], index: 2, kind: output, shape index: {}]
  %s3 = sld [smem:[#allocation0]]
  $region26: #{tpu_custom_call.1} parent=0
    _
  %s5 = ssub.s32 1, %s3
  %s6 = scalar_select 0, %s5, %s3
  $region1: #{tpu_custom_call.1} parent=0
    #allocation2 [shape = 'u8[77824]{0}', space=vmem, size = 0x13000, scoped, tag = 'input window, operand 0, single buffered']
    #allocation3 [shape = 's32[1]{0}', space=sflag, size = 0x4, scoped, tag = 'scoped memory for tpu_custom_call.1']
    #allocation4 [shape = 's32[1]{0}', space=sflag, size = 0x4, scoped, tag = 'scoped memory for tpu_custom_call.1']
    #allocation5 [shape = 'u8[77824]{0}', space=vmem, size = 0x13000, scoped, tag = 'input window, operand 1, single buffered']
    #allocation6 [shape = 's32[1]{0}', space=sflag, size = 0x4, scoped, tag = 'scoped memory for tpu_custom_call.1']
    #allocation7 [shape = 'u8[77824]{0}', space=vmem, size = 0x13000, scoped, tag = 'output window, operand 0, single buffered']
    %7 = vsyncpa [#allocation3], 0
    %8 = vsyncpa [#allocation6], 0
    %9 = vsyncpa [#allocation4], 0
    // Predicated region
    $region2: #{tpu_custom_call.1} parent=1 // pred_check
      _
    $region3: #{tpu_custom_call.1} parent=1 // pred_check_branch
      %11 = sbr.rel (0) target = $region5
    $region4: #{tpu_custom_call.1} parent=1 // pred_region
      %s13 = ssub.s32 2432, 2432
      %14 = vsyncadd [#allocation3], %s13
      %s15 = sshll.u32 [#allocation2], 4
      %s16 = int_to_ptr.vmem [resolvable:$true] %s15
      %21 = dma.hbm_to_vmem [thread:$0]  %s0, 2432, %s16, [#allocation3], 128, 128, 8
    $region5: #{tpu_custom_call.1} parent=1 // pred_fallthru
      _
    // Predicated region
    $region6: #{tpu_custom_call.1} parent=1 // pred_check
      _
    $region7: #{tpu_custom_call.1} parent=1 // pred_check_branch
      %23 = sbr.rel (0) target = $region9
    $region8: #{tpu_custom_call.1} parent=1 // pred_region
      %s25 = ssub.s32 2432, 2432
      %26 = vsyncadd [#allocation6], %s25
      %s27 = sshll.u32 [#allocation5], 4
      %s28 = int_to_ptr.vmem [resolvable:$true] %s27
      %33 = dma.hbm_to_vmem [thread:$0]  %s1, 2432, %s28, [#allocation6], 128, 128, 8
    $region9: #{tpu_custom_call.1} parent=1 // pred_fallthru
      _
    // Predicated region
    $region10: #{tpu_custom_call.1} parent=1 // pred_check
      _
    $region11: #{tpu_custom_call.1} parent=1 // pred_check_branch
      %35 = sbr.rel (0) target = $region13
    $region12: #{tpu_custom_call.1} parent=1 // pred_region
      %36 = dma.done [#allocation3], 2432
    $region13: #{tpu_custom_call.1} parent=1 // pred_fallthru
      _
    // Predicated region
    $region14: #{tpu_custom_call.1} parent=1 // pred_check
      _
    $region15: #{tpu_custom_call.1} parent=1 // pred_check_branch
      %38 = sbr.rel (0) target = $region17
    $region16: #{tpu_custom_call.1} parent=1 // pred_region
      %39 = dma.done [#allocation6], 2432
    $region17: #{tpu_custom_call.1} parent=1 // pred_fallthru
      _
    %v40 = vld [vmem:[#allocation2] sm:$0xff]
    %v41 = vld [vmem:[#allocation2 + $0x8] sm:$0xff]
    %v42 = vld [vmem:[#allocation2 + $0x10] sm:$0xff]
    %v43 = vld [vmem:[#allocation2 + $0x18] sm:$0xff]
    %v44 = vld [vmem:[#allocation2 + $0x20] sm:$0xff]
    %v45 = vld [vmem:[#allocation2 + $0x28] sm:$0xff]
    %v46 = vld [vmem:[#allocation2 + $0x30] sm:$0xff]
    %v47 = vld [vmem:[#allocation2 + $0x38] sm:$0xff]
    %v48 = vld [vmem:[#allocation2 + $0x40] sm:$0xff]
    %v49 = vld [vmem:[#allocation2 + $0x48] sm:$0xff]
    %v50 = vld [vmem:[#allocation2 + $0x50] sm:$0xff]
    %v51 = vld [vmem:[#allocation2 + $0x58] sm:$0xff]
    %v52 = vld [vmem:[#allocation2 + $0x60] sm:$0xff]
    %v53 = vld [vmem:[#allocation2 + $0x68] sm:$0xff]
    %v54 = vld [vmem:[#allocation2 + $0x70] sm:$0xff]
    %v55 = vld [vmem:[#allocation2 + $0x78] sm:$0xff]
    %v56 = vld [vmem:[#allocation2 + $0x80] sm:$0xff]
    %v57 = vld [vmem:[#allocation2 + $0x88] sm:$0xff]
    %v58 = vld [vmem:[#allocation2 + $0x90] sm:$0x7]
    %v59 = vld [vmem:[#allocation5] sm:$0xff]
    %v60 = vld [vmem:[#allocation5 + $0x8] sm:$0xff]
    %v61 = vld [vmem:[#allocation5 + $0x10] sm:$0xff]
    %v62 = vld [vmem:[#allocation5 + $0x18] sm:$0xff]
    %v63 = vld [vmem:[#allocation5 + $0x20] sm:$0xff]
    %v64 = vld [vmem:[#allocation5 + $0x28] sm:$0xff]
    %v65 = vld [vmem:[#allocation5 + $0x30] sm:$0xff]
    %v66 = vld [vmem:[#allocation5 + $0x38] sm:$0xff]
    %v67 = vld [vmem:[#allocation5 + $0x40] sm:$0xff]
    %v68 = vld [vmem:[#allocation5 + $0x48] sm:$0xff]
    %v69 = vld [vmem:[#allocation5 + $0x50] sm:$0xff]
    %v70 = vld [vmem:[#allocation5 + $0x58] sm:$0xff]
    %v71 = vld [vmem:[#allocation5 + $0x60] sm:$0xff]
    %v72 = vld [vmem:[#allocation5 + $0x68] sm:$0xff]
    %v73 = vld [vmem:[#allocation5 + $0x70] sm:$0xff]
    %v74 = vld [vmem:[#allocation5 + $0x78] sm:$0xff]
    %v75 = vld [vmem:[#allocation5 + $0x80] sm:$0xff]
    %v76 = vld [vmem:[#allocation5 + $0x88] sm:$0xff]
    %v77 = vld [vmem:[#allocation5 + $0x90] sm:$0x7]
    %v78 = vadd.f32 %v40, %v59
    %v79 = vadd.f32 %v41, %v60
    %v80 = vadd.f32 %v42, %v61
    %v81 = vadd.f32 %v43, %v62
    %v82 = vadd.f32 %v44, %v63
    %v83 = vadd.f32 %v45, %v64
    %v84 = vadd.f32 %v46, %v65
    %v85 = vadd.f32 %v47, %v66
    %v86 = vadd.f32 %v48, %v67
    %v87 = vadd.f32 %v49, %v68
    %v88 = vadd.f32 %v50, %v69
    %v89 = vadd.f32 %v51, %v70
    %v90 = vadd.f32 %v52, %v71
    %v91 = vadd.f32 %v53, %v72
    %v92 = vadd.f32 %v54, %v73
    %v93 = vadd.f32 %v55, %v74
    %v94 = vadd.f32 %v56, %v75
    %v95 = vadd.f32 %v57, %v76
    %v96 = vadd.f32 %v58, %v77
    %97 = vst [vmem:[#allocation7] sm:$0xff] %v78
    %98 = vst [vmem:[#allocation7 + $0x8] sm:$0xff] %v79
    %99 = vst [vmem:[#allocation7 + $0x10] sm:$0xff] %v80
    %100 = vst [vmem:[#allocation7 + $0x18] sm:$0xff] %v81
    %101 = vst [vmem:[#allocation7 + $0x20] sm:$0xff] %v82
    %102 = vst [vmem:[#allocation7 + $0x28] sm:$0xff] %v83
    %103 = vst [vmem:[#allocation7 + $0x30] sm:$0xff] %v84
    %104 = vst [vmem:[#allocation7 + $0x38] sm:$0xff] %v85
    %105 = vst [vmem:[#allocation7 + $0x40] sm:$0xff] %v86
    %106 = vst [vmem:[#allocation7 + $0x48] sm:$0xff] %v87
    %107 = vst [vmem:[#allocation7 + $0x50] sm:$0xff] %v88
    %108 = vst [vmem:[#allocation7 + $0x58] sm:$0xff] %v89
    %109 = vst [vmem:[#allocation7 + $0x60] sm:$0xff] %v90
    %110 = vst [vmem:[#allocation7 + $0x68] sm:$0xff] %v91
    %111 = vst [vmem:[#allocation7 + $0x70] sm:$0xff] %v92
    %112 = vst [vmem:[#allocation7 + $0x78] sm:$0xff] %v93
    %113 = vst [vmem:[#allocation7 + $0x80] sm:$0xff] %v94
    %114 = vst [vmem:[#allocation7 + $0x88] sm:$0xff] %v95
    %115 = vst [vmem:[#allocation7 + $0x90] sm:$0x7] %v96
    // Predicated region
    $region18: #{tpu_custom_call.1} parent=1 // pred_check
      _
    $region19: #{tpu_custom_call.1} parent=1 // pred_check_branch
      %117 = sbr.rel (0) target = $region21
    $region20: #{tpu_custom_call.1} parent=1 // pred_region
      %s119 = ssub.s32 2432, 2432
      %120 = vsyncadd [#allocation4], %s119
      %s121 = sshll.u32 [#allocation7], 4
      %s122 = int_to_ptr.vmem [resolvable:$true] %s121
      %127 = dma.vmem_to_hbm [thread:$0]  %s122, 2432, %s2, [#allocation4], 128, 128, 8
    $region21: #{tpu_custom_call.1} parent=1 // pred_fallthru
      _
    // Predicated region
    $region22: #{tpu_custom_call.1} parent=1 // pred_check
      _
    $region23: #{tpu_custom_call.1} parent=1 // pred_check_branch
      %129 = sbr.rel (0) target = $region25
    $region24: #{tpu_custom_call.1} parent=1 // pred_region
      %130 = dma.done [#allocation4], 2432
    $region25: #{tpu_custom_call.1} parent=1 // pred_fallthru
      _
    %131 = vsyncpa [#allocation3], 1
    %132 = vsyncpa [#allocation6], 1
    %133 = vsyncpa [#allocation4], 1

</llo_original>
